<compile_context>
chip_gen: v5e
topology: v5e:2x2
jax: 0.10.0
libtpu: 0.0.40
codegen_flags: <defaults>
</compile_context>

<pallas_src>
import functools

import jax
import jax.numpy as jnp
from jax.experimental import pallas as pl
from jax.experimental.pallas import tpu as pltpu


LANE = 128


def _round_up(x, m):
    return ((x + m - 1) // m) * m


def _blob_layout(input_dim, hidden_dim):
    """Column offsets of the packed weight blob (all lane-aligned)."""
    H = hidden_dim
    c_gate = 0                               # gate_w  rows 0:2H, cols 0:4H
    c_fc1 = _round_up(4 * H, LANE)           # fc1_w   rows 0:D,  cols c_fc1:c_fc1+H
    c_fc2 = c_fc1 + _round_up(H, LANE)       # fc2_pad rows 0:H,  cols c_fc2:c_fc2+4H
    n_cols = c_fc2 + _round_up(4 * H, LANE)
    n_rows = _round_up(max(2 * H, input_dim), 8)
    return c_gate, c_fc1, c_fc2, n_rows, n_cols


# ----------------------------- Pallas kernel --------------------------------
def ddpg_critic_kernel(x_ref, h0_ref, w_ref, bias_ref, out_ref, h_scr):
    """One GRU-critic step per grid index t; h carried in VMEM scratch."""
    B, D = x_ref.shape
    H = h0_ref.shape[1]
    _, c_fc1, c_fc2, _, _ = _blob_layout(D, H)
    t = pl.program_id(0)

    @pl.when(t == 0)
    def _():
        h_scr[...] = h0_ref[...]

    bias = bias_ref[...]                     # (3, 4H) f32
    h = h_scr[...]                           # (B, H)  f32
    x = x_ref[...].astype(jnp.bfloat16)      # cast inside kernel (hides under MXU)

    # fc1 + ReLU  (bf16 operands, f32 accumulate; elementwise in f32)
    a = jnp.dot(x, w_ref[0:D, c_fc1:c_fc1 + H],
                preferred_element_type=jnp.float32)
    a = jnp.maximum(a + bias[0:1, :H], 0.0)

    # GRUCell gates, split-accumulate form (no [a|h] lane concat):
    #   cols [0:H)=r, [H:2H)=z, [2H:3H)=gi_n, [3H:4H)=gh_n
    g = (jnp.dot(a.astype(jnp.bfloat16), w_ref[0:H, 0:4 * H],
                 preferred_element_type=jnp.float32)
         + jnp.dot(h.astype(jnp.bfloat16), w_ref[H:2 * H, 0:4 * H],
                   preferred_element_type=jnp.float32)
         + bias[1:2, :])
    r = jax.nn.sigmoid(g[:, 0 * H:1 * H])
    z = jax.nn.sigmoid(g[:, 1 * H:2 * H])
    n = jnp.tanh(g[:, 2 * H:3 * H] + r * g[:, 3 * H:4 * H])
    h_new = (1.0 - z) * n + z * h            # f32 recurrent state
    h_scr[...] = h_new

    # fc2 against pre-padded (H, 4H) weight -> lane-dense (B, 4H) slab with v at
    # lanes H:H+A (other lanes exactly 0 because the weight columns are 0).
    slab = jnp.dot(h_new.astype(jnp.bfloat16), w_ref[0:H, c_fc2:c_fc2 + 4 * H],
                   preferred_element_type=jnp.float32) + bias[2:3, :]
    out_ref[...] = slab                      # full-width unmasked store
    out_ref[:, 0:H] = h_new                  # masked insert of recurrent state


# ------------------------------ Wrappers --------------------------------------
def _ddpg_scan(inputs_seq, h0, w_blob, bias, n_actions):
    """inputs_seq: (T, B, D) f32; h0: (B, H) f32. Returns (v_seq, h_seq)."""
    T, B, D = inputs_seq.shape
    H = h0.shape[1]
    A = n_actions

    bytes_accessed = (inputs_seq.size * 4 + h0.size * 4 + w_blob.size * 2
                      + bias.size * 4 + T * B * 4 * H * 4)
    slab = pl.pallas_call(
        ddpg_critic_kernel,
        out_shape=jax.ShapeDtypeStruct((T, B, 4 * H), jnp.float32),
        grid_spec=pltpu.PrefetchScalarGridSpec(
            num_scalar_prefetch=0,
            grid=(T,),
            in_specs=[
                pl.BlockSpec((None, B, D), lambda t: (t, 0, 0)),      # per-step x
                pl.BlockSpec((B, H), lambda t: (0, 0)),               # h0 (resident)
                pl.BlockSpec(w_blob.shape, lambda t: (0, 0)),         # weights (resident)
                pl.BlockSpec(bias.shape, lambda t: (0, 0)),           # bias (resident)
            ],
            out_specs=pl.BlockSpec((None, B, 4 * H), lambda t: (t, 0, 0)),
            scratch_shapes=[pltpu.VMEM((B, H), jnp.float32)],         # carried h
        ),
        compiler_params=pltpu.CompilerParams(
            dimension_semantics=("arbitrary",)),                      # recurrent axis
        cost_estimate=pl.CostEstimate(
            flops=2 * T * B * (D * H + 2 * H * 4 * H + H * 4 * H),
            transcendentals=3 * T * B * H,
            bytes_accessed=bytes_accessed),
    )(inputs_seq, h0, w_blob, bias)

    h_seq = slab[:, :, :H]
    v_seq = slab[:, :, H:H + A]
    return v_seq, h_seq


@functools.partial(jax.jit, static_argnames=("n_actions",))
def ddpg_critic_forward(inputs, hidden, w_blob, bias, *, n_actions):
    """Single step — exact semantics of the PyTorch forward: returns (v, h)."""
    H = bias.shape[1] // 4
    h0 = hidden.reshape(-1, H).astype(jnp.float32)     # PyTorch: hidden.reshape(-1, H)
    v_seq, h_seq = _ddpg_scan(inputs[None].astype(jnp.float32), h0, w_blob, bias,
                              n_actions)
    return v_seq[0], h_seq[0]


@functools.partial(jax.jit, static_argnames=("n_actions",))
def ddpg_critic_rollout(inputs_seq, hidden, w_blob, bias, *, n_actions):
    """T-step rollout with the time loop inside the kernel (amortized launch/DMA)."""
    H = bias.shape[1] // 4
    h0 = hidden.reshape(-1, H).astype(jnp.float32)
    return _ddpg_scan(inputs_seq.astype(jnp.float32), h0, w_blob, bias, n_actions)


# --------------------------- Parameter init / packing -------------------------
def orthogonal_t(key, out_dim, in_dim, std):
    """Torch-style orthogonal_(std) on an (out, in) matrix, stored transposed as
    (in, out) for the x @ W layout used by the kernel."""
    w = jax.nn.initializers.orthogonal(scale=std)(key, (out_dim, in_dim), jnp.float32)
    return w.T


def init_params(key, input_dim, hidden_dim, n_actions):
    """Raw (unpacked, f32) params matching PyTorch DDPGCritic init semantics."""
    ks = jax.random.split(key, 16)
    H = hidden_dim
    bound = 1.0 / jnp.sqrt(jnp.float32(H))  # torch GRUCell default uniform bound

    def u(k, shape):
        return jax.random.uniform(k, shape, jnp.float32, -bound, bound)

    return {
        # fc1: orthogonal(std=1.0), bias 0  (layer_norm branch in __init__)
        "fc1_w": orthogonal_t(ks[0], H, input_dim, 1.0),
        "fc1_b": jnp.zeros((1, H), jnp.float32),
        # GRUCell weights/biases (torch default uniform init), stored (in, out)
        "w_ir": u(ks[1], (H, H)), "w_iz": u(ks[2], (H, H)), "w_in": u(ks[3], (H, H)),
        "w_hr": u(ks[4], (H, H)), "w_hz": u(ks[5], (H, H)), "w_hn": u(ks[6], (H, H)),
        "b_ir": u(ks[7], (1, H)), "b_iz": u(ks[8], (1, H)), "b_in": u(ks[9], (1, H)),
        "b_hr": u(ks[10], (1, H)), "b_hz": u(ks[11], (1, H)), "b_hn": u(ks[12], (1, H)),
        # fc2: orthogonal(std=1.0), bias 0
        "fc2_w": orthogonal_t(ks[13], n_actions, H, 1.0),
        "fc2_b": jnp.zeros((1, n_actions), jnp.float32),
    }


def pack_params(p, input_dim):
    """One-time offline repack: one lane-aligned bf16 weight blob + one f32 bias blob."""
    H = p["w_ir"].shape[0]
    D = input_dim
    A = p["fc2_w"].shape[1]
    assert 4 * H >= H + A, "output slab (B,4H) cannot hold [h | v]; increase H or pad"

    c_gate, c_fc1, c_fc2, n_rows, n_cols = _blob_layout(D, H)
    zeros_hh = jnp.zeros((H, H), jnp.float32)

    # gate: rows = [a-input | h-input], cols = [r | z | n_input | n_hidden]
    gate_top = jnp.concatenate([p["w_ir"], p["w_iz"], p["w_in"], zeros_hh], axis=1)
    gate_bot = jnp.concatenate([p["w_hr"], p["w_hz"], zeros_hh, p["w_hn"]], axis=1)

    blob = jnp.zeros((n_rows, n_cols), jnp.float32)
    blob = blob.at[0:H, c_gate:c_gate + 4 * H].set(gate_top)
    blob = blob.at[H:2 * H, c_gate:c_gate + 4 * H].set(gate_bot)
    blob = blob.at[0:D, c_fc1:c_fc1 + H].set(p["fc1_w"])
    # fc2 pre-padded to (H, 4H): real columns placed at lanes H:H+A of the slab
    blob = blob.at[0:H, c_fc2 + H:c_fc2 + H + A].set(p["fc2_w"])

    bias = jnp.zeros((3, 4 * H), jnp.float32)
    bias = bias.at[0, :H].set(p["fc1_b"][0])
    gate_b = jnp.concatenate(
        [p["b_ir"] + p["b_hr"], p["b_iz"] + p["b_hz"], p["b_in"], p["b_hn"]],
        axis=1)[0]
    bias = bias.at[1, :].set(gate_b)
    bias = bias.at[2, H:H + A].set(p["fc2_b"][0])

    return {"w_blob": blob.astype(jnp.bfloat16), "bias": bias}


# --------------------------- Pure-JAX reference -------------------------------
def reference_forward(inputs, hidden, p, hidden_dim, matmul_dtype=jnp.bfloat16):
    """Literal PyTorch GRUCell formulation on the raw params; matmul operands cast
    to `matmul_dtype`, f32 accumulation / elementwise."""
    def mm(lhs, rhs):
        return jnp.dot(lhs.astype(matmul_dtype), rhs.astype(matmul_dtype),
                       preferred_element_type=jnp.float32)

    h = hidden.reshape(-1, hidden_dim).astype(jnp.float32)
    a = jnp.maximum(mm(inputs, p["fc1_w"]) + p["fc1_b"], 0.0)
    r = jax.nn.sigmoid(mm(a, p["w_ir"]) + p["b_ir"] + mm(h, p["w_hr"]) + p["b_hr"])
    z = jax.nn.sigmoid(mm(a, p["w_iz"]) + p["b_iz"] + mm(h, p["w_hz"]) + p["b_hz"])
    n = jnp.tanh(mm(a, p["w_in"]) + p["b_in"] + r * (mm(h, p["w_hn"]) + p["b_hn"]))
    h_new = (1.0 - z) * n + z * h
    v = mm(h_new, p["fc2_w"]) + p["fc2_b"]
    return v, h_new


def reference_rollout(inputs_seq, hidden, p, hidden_dim, matmul_dtype=jnp.bfloat16):
    h = hidden
    vs, hs = [], []
    for t in range(inputs_seq.shape[0]):
        v, h = reference_forward(inputs_seq[t], h, p, hidden_dim, matmul_dtype)
        vs.append(v); hs.append(h)
    return jnp.stack(vs), jnp.stack(hs)


# ------------------------------- Main -----------------------------------------
if __name__ == "__main__":
    # Small shapes consistent with the module:
    #   critic_input_shape=32, rnn_hidden_dim=32, n_actions=8,
    #   batch=16 (multiple of 16 for bf16 sublane packing), rollout length T=8.
    B, D, H, A, T = 16, 32, 32, 8, 8

    key = jax.random.PRNGKey(0)
    k_params, k_x, k_h = jax.random.split(key, 3)

    raw_params = init_params(k_params, D, H, A)
    packed = pack_params(raw_params, D)
    w_blob, bias = packed["w_blob"], packed["bias"]

    inputs_seq = jax.random.normal(k_x, (T, B, D), jnp.float32)
    hidden = jax.random.normal(k_h, (B, H), jnp.float32)

    # ---- single step (exact PyTorch forward semantics) ----
    v, h = ddpg_critic_forward(inputs_seq[0], hidden, w_blob, bias, n_actions=A)
    jax.block_until_ready((v, h))
    assert v.shape == (B, A) and h.shape == (B, H)

    v_ref, h_ref = reference_forward(inputs_seq[0], hidden, raw_params, H, jnp.bfloat16)
    assert jnp.allclose(v, v_ref, atol=2e-3, rtol=2e-3)
    assert jnp.allclose(h, h_ref, atol=2e-3, rtol=2e-3)

    # Full-f32 semantic sanity check (loose tol accounts for bf16 matmuls).
    v32, h32 = reference_forward(inputs_seq[0], hidden, raw_params, H, jnp.float32)
    assert jnp.allclose(v, v32, atol=5e-2, rtol=5e-2)
    assert jnp.allclose(h, h32, atol=5e-2, rtol=5e-2)

    # ---- T-step rollout with the time loop inside the kernel ----
    v_seq, h_seq = ddpg_critic_rollout(inputs_seq, hidden, w_blob, bias, n_actions=A)
    jax.block_until_ready((v_seq, h_seq))
    assert v_seq.shape == (T, B, A) and h_seq.shape == (T, B, H)

    v_seq_ref, h_seq_ref = reference_rollout(inputs_seq, hidden, raw_params, H,
                                             jnp.bfloat16)
    assert jnp.allclose(v_seq, v_seq_ref, atol=5e-3, rtol=5e-3)
    assert jnp.allclose(h_seq, h_seq_ref, atol=5e-3, rtol=5e-3)

    print("KERNEL_OK")
</pallas_src>

<mosaic_0001>
module attributes {stable_mosaic.version = 11 : i64} {
  func.func @ddpg_critic_kernel(%arg0: i32, %arg1: memref<1x16x32xf32, #tpu.memory_space<vmem>>, %arg2: memref<16x32xf32, #tpu.memory_space<vmem>>, %arg3: memref<64x384xbf16, #tpu.memory_space<vmem>>, %arg4: memref<3x128xf32, #tpu.memory_space<vmem>>, %arg5: memref<1x16x128xf32, #tpu.memory_space<vmem>>, %arg6: memref<16x32xf32, #tpu.memory_space<vmem>>) attributes {dimension_semantics = [#tpu.dimension_semantics<arbitrary>], iteration_bounds = array<i64: 1>, scalar_prefetch = 0 : i64, scratch_operands = 1 : i64, tpu.core_type = #tpu.core_type<tc>, window_params = [{transform_indices = @transform_0, window_bounds = array<i64: 1, 16, 32>}, {pipeline_mode = #tpu.pipeline_mode<synchronous>, transform_indices = @transform_1, window_bounds = array<i64: 16, 32>}, {pipeline_mode = #tpu.pipeline_mode<synchronous>, transform_indices = @transform_2, window_bounds = array<i64: 64, 384>}, {pipeline_mode = #tpu.pipeline_mode<synchronous>, transform_indices = @transform_3, window_bounds = array<i64: 3, 128>}, {transform_indices = @transform_4, window_bounds = array<i64: 1, 16, 128>}]} {
    %c0_i32 = arith.constant 0 : i32
    %0 = arith.cmpi eq, %arg0, %c0_i32 : i32
    %1 = arith.extui %0 : i1 to i32
    %c0_i32_0 = arith.constant 0 : i32
    %2 = arith.cmpi ne, %1, %c0_i32_0 : i32
    scf.if %2 {
      %c0_27 = arith.constant 0 : index
      %c0_28 = arith.constant 0 : index
      %60 = vector.load %arg2[%c0_27, %c0_28] : memref<16x32xf32, #tpu.memory_space<vmem>>, vector<16x32xf32>
      %c0_29 = arith.constant 0 : index
      %c0_30 = arith.constant 0 : index
      %61 = vector.load %arg6[%c0_29, %c0_30] : memref<16x32xf32, #tpu.memory_space<vmem>>, vector<16x32xf32>
      tpu.vector_store %arg6[%c0_29, %c0_30], %60 {strides = array<i32>} : memref<16x32xf32, #tpu.memory_space<vmem>>, vector<16x32xf32>,
    } else {
    }
    %c0 = arith.constant 0 : index
    %c0_1 = arith.constant 0 : index
    %3 = vector.load %arg4[%c0, %c0_1] : memref<3x128xf32, #tpu.memory_space<vmem>>, vector<3x128xf32>
    %c0_2 = arith.constant 0 : index
    %c0_3 = arith.constant 0 : index
    %4 = vector.load %arg6[%c0_2, %c0_3] : memref<16x32xf32, #tpu.memory_space<vmem>>, vector<16x32xf32>
    %c0_4 = arith.constant 0 : index
    %c0_5 = arith.constant 0 : index
    %c0_6 = arith.constant 0 : index
    %5 = vector.load %arg1[%c0_4, %c0_5, %c0_6] : memref<1x16x32xf32, #tpu.memory_space<vmem>>, vector<1x16x32xf32>
    %6 = vector.shape_cast %5 : vector<1x16x32xf32> to vector<16x32xf32>
    %7 = arith.truncf %6 : vector<16x32xf32> to vector<16x32xbf16>
    %c0_7 = arith.constant 0 : index
    %c128 = arith.constant 128 : index
    %8 = vector.load %arg3[%c0_7, %c128] : memref<64x384xbf16, #tpu.memory_space<vmem>>, vector<32x32xbf16>
    %cst = arith.constant dense<0.000000e+00> : vector<16x32xf32>
    %9 = tpu.matmul %7, %8, %cst {dimension_numbers = #tpu.dot_dimension_numbers<[1], [0], [0], [1], [0, 0, 1, 1], [], []>} : vector<16x32xbf16>, vector<32x32xbf16>, vector<16x32xf32> -> vector<16x32xf32>
    %10 = vector.extract_strided_slice %3 {offsets = [0, 0], sizes = [1, 32], strides = [1, 1]} : vector<3x128xf32> to vector<1x32xf32>
    %11 = vector.broadcast %10 : vector<1x32xf32> to vector<16x32xf32>
    %12 = arith.addf %9, %11 : vector<16x32xf32>
    %cst_8 = arith.constant 0.000000e+00 : f32
    %13 = vector.broadcast %cst_8 : f32 to vector<16x32xf32>
    %14 = arith.maximumf %12, %13 : vector<16x32xf32>
    %15 = arith.truncf %14 : vector<16x32xf32> to vector<16x32xbf16>
    %c0_9 = arith.constant 0 : index
    %c0_10 = arith.constant 0 : index
    %16 = vector.load %arg3[%c0_9, %c0_10] : memref<64x384xbf16, #tpu.memory_space<vmem>>, vector<32x128xbf16>
    %cst_11 = arith.constant dense<0.000000e+00> : vector<16x128xf32>
    %17 = tpu.matmul %15, %16, %cst_11 {dimension_numbers = #tpu.dot_dimension_numbers<[1], [0], [0], [1], [0, 0, 1, 1], [], []>} : vector<16x32xbf16>, vector<32x128xbf16>, vector<16x128xf32> -> vector<16x128xf32>
    %18 = arith.truncf %4 : vector<16x32xf32> to vector<16x32xbf16>
    %c32 = arith.constant 32 : index
    %c0_12 = arith.constant 0 : index
    %19 = vector.load %arg3[%c32, %c0_12] : memref<64x384xbf16, #tpu.memory_space<vmem>>, vector<32x128xbf16>
    %cst_13 = arith.constant dense<0.000000e+00> : vector<16x128xf32>
    %20 = tpu.matmul %18, %19, %cst_13 {dimension_numbers = #tpu.dot_dimension_numbers<[1], [0], [0], [1], [0, 0, 1, 1], [], []>} : vector<16x32xbf16>, vector<32x128xbf16>, vector<16x128xf32> -> vector<16x128xf32>
    %21 = arith.addf %17, %20 : vector<16x128xf32>
    %22 = vector.extract_strided_slice %3 {offsets = [1, 0], sizes = [1, 128], strides = [1, 1]} : vector<3x128xf32> to vector<1x128xf32>
    %23 = vector.broadcast %22 : vector<1x128xf32> to vector<16x128xf32>
    %24 = arith.addf %21, %23 : vector<16x128xf32>
    %25 = vector.extract_strided_slice %24 {offsets = [0, 0], sizes = [16, 32], strides = [1, 1]} : vector<16x128xf32> to vector<16x32xf32>
    %26 = arith.negf %25 : vector<16x32xf32>
    %27 = math.exp %26 : vector<16x32xf32>
    %cst_14 = arith.constant 1.000000e+00 : f32
    %28 = vector.broadcast %cst_14 : f32 to vector<16x32xf32>
    %29 = arith.addf %28, %27 : vector<16x32xf32>
    %30 = arith.divf %28, %29 : vector<16x32xf32>
    %31 = vector.extract_strided_slice %24 {offsets = [0, 32], sizes = [16, 32], strides = [1, 1]} : vector<16x128xf32> to vector<16x32xf32>
    %32 = arith.negf %31 : vector<16x32xf32>
    %33 = math.exp %32 : vector<16x32xf32>
    %cst_15 = arith.constant 1.000000e+00 : f32
    %34 = vector.broadcast %cst_15 : f32 to vector<16x32xf32>
    %35 = arith.addf %34, %33 : vector<16x32xf32>
    %36 = arith.divf %34, %35 : vector<16x32xf32>
    %37 = vector.extract_strided_slice %24 {offsets = [0, 64], sizes = [16, 32], strides = [1, 1]} : vector<16x128xf32> to vector<16x32xf32>
    %38 = vector.extract_strided_slice %24 {offsets = [0, 96], sizes = [16, 32], strides = [1, 1]} : vector<16x128xf32> to vector<16x32xf32>
    %39 = arith.mulf %30, %38 : vector<16x32xf32>
    %40 = arith.addf %37, %39 : vector<16x32xf32>
    %41 = math.tanh %40 : vector<16x32xf32>
    %cst_16 = arith.constant 1.000000e+00 : f32
    %42 = vector.broadcast %cst_16 : f32 to vector<16x32xf32>
    %43 = arith.subf %42, %36 : vector<16x32xf32>
    %44 = arith.mulf %43, %41 : vector<16x32xf32>
    %45 = arith.mulf %36, %4 : vector<16x32xf32>
    %46 = arith.addf %44, %45 : vector<16x32xf32>
    %c0_17 = arith.constant 0 : index
    %c0_18 = arith.constant 0 : index
    %47 = vector.load %arg6[%c0_17, %c0_18] : memref<16x32xf32, #tpu.memory_space<vmem>>, vector<16x32xf32>
    tpu.vector_store %arg6[%c0_17, %c0_18], %46 {strides = array<i32>} : memref<16x32xf32, #tpu.memory_space<vmem>>, vector<16x32xf32>,
    %48 = arith.truncf %46 : vector<16x32xf32> to vector<16x32xbf16>
    %c0_19 = arith.constant 0 : index
    %c256 = arith.constant 256 : index
    %49 = vector.load %arg3[%c0_19, %c256] : memref<64x384xbf16, #tpu.memory_space<vmem>>, vector<32x128xbf16>
    %cst_20 = arith.constant dense<0.000000e+00> : vector<16x128xf32>
    %50 = tpu.matmul %48, %49, %cst_20 {dimension_numbers = #tpu.dot_dimension_numbers<[1], [0], [0], [1], [0, 0, 1, 1], [], []>} : vector<16x32xbf16>, vector<32x128xbf16>, vector<16x128xf32> -> vector<16x128xf32>
    %51 = vector.extract_strided_slice %3 {offsets = [2, 0], sizes = [1, 128], strides = [1, 1]} : vector<3x128xf32> to vector<1x128xf32>
    %52 = vector.broadcast %51 : vector<1x128xf32> to vector<16x128xf32>
    %53 = arith.addf %50, %52 : vector<16x128xf32>
    %c0_21 = arith.constant 0 : index
    %c0_22 = arith.constant 0 : index
    %c0_23 = arith.constant 0 : index
    %54 = vector.load %arg5[%c0_21, %c0_22, %c0_23] : memref<1x16x128xf32, #tpu.memory_space<vmem>>, vector<1x16x128xf32>
    %55 = vector.shape_cast %54 : vector<1x16x128xf32> to vector<16x128xf32>
    %56 = vector.shape_cast %53 : vector<16x128xf32> to vector<1x16x128xf32>
    tpu.vector_store %arg5[%c0_21, %c0_22, %c0_23], %56 {strides = array<i32>} : memref<1x16x128xf32, #tpu.memory_space<vmem>>, vector<1x16x128xf32>,
    %c0_24 = arith.constant 0 : index
    %c0_25 = arith.constant 0 : index
    %c0_26 = arith.constant 0 : index
    %57 = vector.load %arg5[%c0_24, %c0_25, %c0_26] : memref<1x16x128xf32, #tpu.memory_space<vmem>>, vector<1x16x32xf32>
    %58 = vector.shape_cast %57 : vector<1x16x32xf32> to vector<16x32xf32>
    %59 = vector.shape_cast %46 : vector<16x32xf32> to vector<1x16x32xf32>
    tpu.vector_store %arg5[%c0_24, %c0_25, %c0_26], %59 {strides = array<i32>} : memref<1x16x128xf32, #tpu.memory_space<vmem>>, vector<1x16x32xf32>,
    return
  }
  func.func @transform_0(%arg0: i32) -> (i32, i32, i32) {
    %c0_i32 = arith.constant 0 : i32
    %c0_i32_0 = arith.constant 0 : i32
    %c0_i32_1 = arith.constant 0 : i32
    return %arg0, %c0_i32, %c0_i32_0 : i32, i32, i32
  }
  func.func @transform_1(%arg0: i32) -> (i32, i32) {
    %c0_i32 = arith.constant 0 : i32
    %c0_i32_0 = arith.constant 0 : i32
    %c0_i32_1 = arith.constant 0 : i32
    return %c0_i32, %c0_i32_0 : i32, i32
  }
  func.func @transform_2(%arg0: i32) -> (i32, i32) {
    %c0_i32 = arith.constant 0 : i32
    %c0_i32_0 = arith.constant 0 : i32
    %c0_i32_1 = arith.constant 0 : i32
    return %c0_i32, %c0_i32_0 : i32, i32
  }
  func.func @transform_3(%arg0: i32) -> (i32, i32) {
    %c0_i32 = arith.constant 0 : i32
    %c0_i32_0 = arith.constant 0 : i32
    %c0_i32_1 = arith.constant 0 : i32
    return %c0_i32, %c0_i32_0 : i32, i32
  }
  func.func @transform_4(%arg0: i32) -> (i32, i32, i32) {
    %c0_i32 = arith.constant 0 : i32
    %c0_i32_0 = arith.constant 0 : i32
    %c0_i32_1 = arith.constant 0 : i32
    return %arg0, %c0_i32, %c0_i32_0 : i32, i32, i32
  }
}

</mosaic_0001>

<llo_original>
// kernel: ddpg_critic_forward.1
$region0: #{ddpg_critic_forward.1}
  #allocation0 [shape = 'u32[]', space=smem, size = 0x4, offset = 0x4, fixed_abs, tag = 'smem constant byte address 0x4 - core index']
  #allocation1 [shape = 'u32[72,128]{1,0:T(1,128)}', space=vmem, size = 0x9000, scoped, tag = 'internal scratch']
  #allocation2 [shape = 'f32[16,32]{1,0:T(8,128)}', space=vmem, size = 0x2000, scoped, tag = 'scratch operand']
  %s0 = inlined_call_operand.hbm [shape: f32[1,16,32], index: 0, kind: input, shape index: {}]
  %s1 = inlined_call_operand.hbm [shape: f32[16,32], index: 1, kind: input, shape index: {}]
  %s2 = inlined_call_operand.hbm [shape: bf16[64,384], index: 2, kind: input, shape index: {}]
  %s3 = inlined_call_operand.hbm [shape: f32[3,128], index: 3, kind: input, shape index: {}]
  %s4 = inlined_call_operand.vmem [shape: f32[1,16,128], index: 4, kind: output, shape index: {}]
  %s5 = sld [smem:[#allocation0]]
  $region46: #{ddpg_critic_forward.1} parent=0
    _
  %s7 = ssub.s32 1, %s5
  %s8 = scalar_select 0, %s7, %s5
  $region1: #{ddpg_critic_forward.1} parent=0
    #allocation3 [shape = 'u8[8192]{0}', space=vmem, size = 0x2000, scoped, tag = 'input window, operand 0, single buffered']
    #allocation4 [shape = 's32[1]{0}', space=sflag, size = 0x4, scoped, tag = 'scoped memory for ddpg_critic_forward.1']
    #allocation5 [shape = 'u8[8192]{0}', space=vmem, size = 0x2000, scoped, tag = 'input window, operand 1, single buffered']
    #allocation6 [shape = 's32[1]{0}', space=sflag, size = 0x4, scoped, tag = 'scoped memory for ddpg_critic_forward.1']
    #allocation7 [shape = 'u8[49152]{0}', space=vmem, size = 0xc000, scoped, tag = 'input window, operand 2, single buffered']
    #allocation8 [shape = 'u8[2048]{0}', space=vmem, size = 0x800, scoped, tag = 'input window, operand 3, single buffered']
    #allocation9 [shape = 's32[1]{0}', space=sflag, size = 0x4, scoped, tag = 'scoped memory for ddpg_critic_forward.1']
    %9 = vsyncpa [#allocation4], 0
    %10 = vsyncpa [#allocation6], 0
    %11 = vsyncpa [#allocation9], 0
    // Predicated region
    $region2: #{ddpg_critic_forward.1} parent=1 // pred_check
      _
    $region3: #{ddpg_critic_forward.1} parent=1 // pred_check_branch
      %13 = sbr.rel (0) target = $region5
    $region4: #{ddpg_critic_forward.1} parent=1 // pred_region
      %15 = vsyncadd [#allocation4], 0
      %s16 = sshll.u32 %s0, 4
      %s17 = int_to_ptr.hbm [resolvable:$true] %s16
      %s18 = sshll.u32 [#allocation3], 4
      %s19 = int_to_ptr.vmem [resolvable:$true] %s18
      %24 = dma.hbm_to_vmem [thread:$0]  %s17, 256, %s19, [#allocation4], 128, 128, 8
    $region5: #{ddpg_critic_forward.1} parent=1 // pred_fallthru
      _
    // Predicated region
    $region6: #{ddpg_critic_forward.1} parent=1 // pred_check
      _
    $region7: #{ddpg_critic_forward.1} parent=1 // pred_check_branch
      %26 = sbr.rel (0) target = $region9
    $region8: #{ddpg_critic_forward.1} parent=1 // pred_region
      %28 = vsyncadd [#allocation6], 0
      %s29 = sshll.u32 %s1, 4
      %s30 = int_to_ptr.hbm [resolvable:$true] %s29
      %s31 = sshll.u32 [#allocation5], 4
      %s32 = int_to_ptr.vmem [resolvable:$true] %s31
      %37 = dma.hbm_to_vmem [thread:$0]  %s30, 256, %s32, [#allocation6], 128, 128, 8
    $region9: #{ddpg_critic_forward.1} parent=1 // pred_fallthru
      _
    // Predicated region
    $region10: #{ddpg_critic_forward.1} parent=1 // pred_check
      _
    $region11: #{ddpg_critic_forward.1} parent=1 // pred_check_branch
      %39 = sbr.rel (0) target = $region13
    $region12: #{ddpg_critic_forward.1} parent=1 // pred_region
      %41 = vsyncadd [#allocation6], 0
      %s42 = sshll.u32 %s2, 4
      %s43 = int_to_ptr.hbm [resolvable:$true] %s42
      %s44 = sshll.u32 [#allocation7], 4
      %s45 = int_to_ptr.vmem [resolvable:$true] %s44
      %50 = dma.hbm_to_vmem [thread:$0]  %s43, 1536, %s45, [#allocation6], 192, 192, 12
    $region13: #{ddpg_critic_forward.1} parent=1 // pred_fallthru
      _
    // Predicated region
    $region14: #{ddpg_critic_forward.1} parent=1 // pred_check
      _
    $region15: #{ddpg_critic_forward.1} parent=1 // pred_check_branch
      %52 = sbr.rel (0) target = $region17
    $region16: #{ddpg_critic_forward.1} parent=1 // pred_region
      %54 = vsyncadd [#allocation9], 0
      %s56 = sshll.u32 %s3, 4
      %s57 = int_to_ptr.hbm [resolvable:$true] %s56
      %s58 = sshll.u32 [#allocation8], 4
      %s59 = int_to_ptr.vmem [resolvable:$true] %s58
      %61 = dma.hbm_to_vmem [thread:$0]  %s57, 64, %s59, [#allocation9]
    $region17: #{ddpg_critic_forward.1} parent=1 // pred_fallthru
      _
    // Predicated region
    $region18: #{ddpg_critic_forward.1} parent=1 // pred_check
      _
    $region19: #{ddpg_critic_forward.1} parent=1 // pred_check_branch
      %63 = sbr.rel (0) target = $region21
    $region20: #{ddpg_critic_forward.1} parent=1 // pred_region
      %65 = dma.done [#allocation4], 256
    $region21: #{ddpg_critic_forward.1} parent=1 // pred_fallthru
      _
    // Predicated region
    $region22: #{ddpg_critic_forward.1} parent=1 // pred_check
      _
    $region23: #{ddpg_critic_forward.1} parent=1 // pred_check_branch
      %67 = sbr.rel (0) target = $region25
    $region24: #{ddpg_critic_forward.1} parent=1 // pred_region
      %69 = dma.done [#allocation6], 256
    $region25: #{ddpg_critic_forward.1} parent=1 // pred_fallthru
      _
    // Predicated region
    $region26: #{ddpg_critic_forward.1} parent=1 // pred_check
      _
    $region27: #{ddpg_critic_forward.1} parent=1 // pred_check_branch
      %71 = sbr.rel (0) target = $region29
    $region28: #{ddpg_critic_forward.1} parent=1 // pred_region
      %73 = dma.done [#allocation6], 1536
    $region29: #{ddpg_critic_forward.1} parent=1 // pred_fallthru
      _
    // Predicated region
    $region30: #{ddpg_critic_forward.1} parent=1 // pred_check
      _
    $region31: #{ddpg_critic_forward.1} parent=1 // pred_check_branch
      %75 = sbr.rel (0) target = $region33
    $region32: #{ddpg_critic_forward.1} parent=1 // pred_region
      %77 = dma.done [#allocation9], 64
    $region33: #{ddpg_critic_forward.1} parent=1 // pred_fallthru
      _
    %p79 = scmp.eq.s32.totalorder 0, 0
    // Predicated region
    $region34: #{ddpg_critic_forward.1} parent=1 // pred_check
      %p80 = pneg %p79
    $region35: #{ddpg_critic_forward.1} parent=1 // pred_check_branch
      %82 = sbr.rel (%p80) target = $region37
    $region36: #{ddpg_critic_forward.1} parent=1 // pred_region
      %v83 = vld [vmem:[#allocation5] sm:$0xff]
      %v84 = vld [vmem:[#allocation5 + $0x8] sm:$0xff]
      %vm85 = vcmask 261120
      %86 = vst.msk [vmem:[#allocation2] sm:$0xff] %vm85, %v83
      %87 = vst.msk [vmem:[#allocation2 + $0x8] sm:$0xff] %vm85, %v84
    $region37: #{ddpg_critic_forward.1} parent=1 // pred_fallthru
      _
    %v88 = vld [vmem:[#allocation8] sm:$0x7]
    %v89 = vld [vmem:[#allocation2] sm:$0xff]
    %v90 = vld [vmem:[#allocation2 + $0x8] sm:$0xff]
    %v91 = vld [vmem:[#allocation3] sm:$0xff]
    %v92 = vld [vmem:[#allocation3 + $0x8] sm:$0xff]
    %v93 = vpack.c.bf16 %v92, %v91
    %v94 = vld [vmem:[#allocation7 + $0x4] sm:$0xf]
    %v95 = vld [vmem:[#allocation7 + $0x10] sm:$0xf]
    %v96 = vld [vmem:[#allocation7 + $0x1c] sm:$0xf]
    %v97 = vld [vmem:[#allocation7 + $0x28] sm:$0xf]
    %v98 = vperm.slane %v88, 0
    %v103 = vunpack.c.l.b16 %v94
    %v104 = vunpack.c.l.b16 %v95
    %v105 = vunpack.c.l.b16 %v96
    %v106 = vunpack.c.l.b16 %v97
    %v107 = vpack.c.b16 %v104, %v103
    %v108 = vpack.c.b16 %v106, %v105
    %vm111 = vcmask 261120
    %v113 = vsel %vm111, %v93, 0
    %115 = vmatpush.bf16.msra.mxu0 0
    %116 = vmatpush.bf16.msra.mxu0 0
    %117 = vmatpush.bf16.msra.mxu0 0
    %118 = vmatpush.bf16.msra.mxu0 0
    %119 = vmatpush.bf16.msra.mxu0 0
    %120 = vmatpush.bf16.msra.mxu0 0
    %121 = vmatpush.bf16.msra.mxu0 %v108
    %122 = vmatpush.bf16.msra.mxu0 %v107
    %123 = vmatmul.bf16.gmra.mxu0 %v113
    %v124 = vpop.f32.mrf.mxu0
    %v125 = vadd.f32 %v98, %v124
    %v126 = vpop.f32.mrf.mxu0
    %v127 = vadd.f32 %v98, %v126
    %128 = vdwg.mxu0
    %v129 = vmax.f32 %v125, 0.0
    %v130 = vmax.f32 %v127, 0.0
    %v131 = vpack.c.bf16 %v130, %v129
    %v132 = vld [vmem:[#allocation7] sm:$0xf]
    %v133 = vld [vmem:[#allocation7 + $0xc] sm:$0xf]
    %v134 = vld [vmem:[#allocation7 + $0x18] sm:$0xf]
    %v135 = vld [vmem:[#allocation7 + $0x24] sm:$0xf]
    %v136 = vpack.c.bf16 %v90, %v89
    %v137 = vld [vmem:[#allocation7 + $0x30] sm:$0xf]
    %v138 = vld [vmem:[#allocation7 + $0x3c] sm:$0xf]
    %v139 = vld [vmem:[#allocation7 + $0x48] sm:$0xf]
    %v140 = vld [vmem:[#allocation7 + $0x54] sm:$0xf]
    %v145 = vunpack.c.l.b16 %v137
    %v146 = vunpack.c.l.b16 %v138
    %v147 = vunpack.c.l.b16 %v139
    %v148 = vunpack.c.l.b16 %v140
    %v149 = vpack.c.b16 %v146, %v145
    %v150 = vpack.c.b16 %v148, %v147
    %v154 = vsel %vm111, %v136, 0
    %156 = vmatpush.bf16.msra.mxu0 0
    %157 = vmatpush.bf16.msra.mxu0 0
    %158 = vmatpush.bf16.msra.mxu0 0
    %159 = vmatpush.bf16.msra.mxu0 0
    %160 = vmatpush.bf16.msra.mxu0 0
    %161 = vmatpush.bf16.msra.mxu0 0
    %162 = vmatpush.bf16.msra.mxu0 %v150
    %163 = vmatpush.bf16.msra.mxu0 %v149
    %164 = vmatmul.bf16.gmra.mxu0 %v154
    %v165 = vpop.f32.mrf.mxu0
    %v166 = vadd.f32 0.0, %v165
    %v167 = vpop.f32.mrf.mxu0
    %v168 = vadd.f32 0.0, %v167
    %169 = vdwg.mxu0
    %v174 = vunpack.c.l.b16 %v132
    %v175 = vunpack.c.l.b16 %v133
    %v176 = vunpack.c.l.b16 %v134
    %v177 = vunpack.c.l.b16 %v135
    %v178 = vpack.c.b16 %v175, %v174
    %v179 = vpack.c.b16 %v177, %v176
    %v183 = vsel %vm111, %v131, 0
    %185 = vmatpush.bf16.msra.mxu0 0
    %186 = vmatpush.bf16.msra.mxu0 0
    %187 = vmatpush.bf16.msra.mxu0 0
    %188 = vmatpush.bf16.msra.mxu0 0
    %189 = vmatpush.bf16.msra.mxu0 0
    %190 = vmatpush.bf16.msra.mxu0 0
    %191 = vmatpush.bf16.msra.mxu0 %v179
    %192 = vmatpush.bf16.msra.mxu0 %v178
    %193 = vmatmul.bf16.gmra.mxu0 %v183
    %v194 = vpop.f32.mrf.mxu0
    %v195 = vadd.f32 %v166, %v194
    %v196 = vpop.f32.mrf.mxu0
    %v197 = vadd.f32 %v168, %v196
    %198 = vdwg.mxu0
    %v199 = vperm.slane %v88, 1
    %v200 = vadd.f32 %v195, %v199
    %v201 = vadd.f32 %v197, %v199
    %v202 = vxor.u32 %v200, 2147483648
    %v203 = vxor.u32 %v201, 2147483648
    %v204 = vmul.f32 %v202, 1.442695
    %v205 = vpow.pop %v204
    %v206 = vmul.f32 %v203, 1.442695
    %v207 = vpow.pop %v206
    %v208 = vadd.f32 %v205, 1.0
    %v209 = vadd.f32 %v207, 1.0
    %v210 = vrcp.pop %v208
    %v211 = vmul.f32 %v208, %v210
    %v212 = vsub.f32 1.0, %v211
    %v213 = vmul.f32 %v210, %v212
    %v214 = vadd.f32 %v210, %v213
    %vm215 = vweird.f32 %v208
    %vm216 = vweird.f32 %v210
    %vm217 = vmor %vm215, %vm216
    %v218 = vsel %vm217, %v210, %v214
    %v219 = vand.u32 2147483647, %v208
    %vm220 = vcmp.eq.f32.partialorder %v219, 8.507059e+37
    %v221 = vand.u32 %v208, 2147483648
    %v222 = vor.u32 1.1754944e-38, %v221
    %v223 = vsel %vm220, %v222, %v218
    %v224 = vmul.f32 1.0, %v223
    %v225 = vrcp.pop %v209
    %v226 = vmul.f32 %v209, %v225
    %v227 = vsub.f32 1.0, %v226
    %v228 = vmul.f32 %v225, %v227
    %v229 = vadd.f32 %v225, %v228
    %vm230 = vweird.f32 %v209
    %vm231 = vweird.f32 %v225
    %vm232 = vmor %vm230, %vm231
    %v233 = vsel %vm232, %v225, %v229
    %v234 = vand.u32 2147483647, %v209
    %vm235 = vcmp.eq.f32.partialorder %v234, 8.507059e+37
    %v236 = vand.u32 %v209, 2147483648
    %v237 = vor.u32 1.1754944e-38, %v236
    %v238 = vsel %vm235, %v237, %v233
    %v239 = vmul.f32 1.0, %v238
    %242 = vrot.lane.b32.xlu0 %v200, 32
    %v243 = vpop.permute.xlu0 %242
    %244 = vrot.lane.b32.xlu0 %v201, 32
    %v245 = vpop.permute.xlu0 %244
    %v248 = vmul.f32 %v224, %v243
    %v249 = vmul.f32 %v239, %v245
    %252 = vrot.lane.b32.xlu0 %v248, 64
    %v253 = vpop.permute.xlu0 %252
    %254 = vrot.lane.b32.xlu0 %v249, 64
    %v255 = vpop.permute.xlu0 %254
    %v258 = vadd.f32 %v200, %v253
    %v259 = vadd.f32 %v201, %v255
    %v260 = vtanh.pop %v258
    %v261 = vtanh.pop %v259
    %v262 = vsub.f32 1.0, %v224
    %v263 = vsub.f32 1.0, %v239
    %266 = vrot.lane.b32.xlu0 %v260, 96
    %v267 = vpop.permute.xlu0 %266
    %268 = vrot.lane.b32.xlu0 %v261, 96
    %v269 = vpop.permute.xlu0 %268
    %v272 = vmul.f32 %v262, %v267
    %v273 = vmul.f32 %v263, %v269
    %276 = vrot.lane.b32.xlu0 %v89, 32
    %v277 = vpop.permute.xlu0 %276
    %278 = vrot.lane.b32.xlu0 %v90, 32
    %v279 = vpop.permute.xlu0 %278
    %v282 = vmul.f32 %v224, %v277
    %v283 = vmul.f32 %v239, %v279
    %v284 = vadd.f32 %v272, %v282
    %v285 = vadd.f32 %v273, %v283
    %288 = vrot.lane.b32.xlu0 %v284, 96
    %v289 = vpop.permute.xlu0 %288
    %290 = vrot.lane.b32.xlu0 %v285, 96
    %v291 = vpop.permute.xlu0 %290
    %294 = vst.msk [vmem:[#allocation2] sm:$0xff] %vm111, %v289
    %295 = vst.msk [vmem:[#allocation2 + $0x8] sm:$0xff] %vm111, %v291
    %v296 = vpack.c.bf16 %v285, %v284
    %v297 = vld [vmem:[#allocation7 + $0x8] sm:$0xf]
    %v298 = vld [vmem:[#allocation7 + $0x14] sm:$0xf]
    %v299 = vld [vmem:[#allocation7 + $0x20] sm:$0xf]
    %v300 = vld [vmem:[#allocation7 + $0x2c] sm:$0xf]
    %v301 = vperm.slane %v88, 2
    %303 = vrot.lane.b32.xlu0 %v296, 96
    %v304 = vpop.permute.xlu0 %303
    %v309 = vunpack.c.l.b16 %v297
    %v310 = vunpack.c.l.b16 %v298
    %v311 = vunpack.c.l.b16 %v299
    %v312 = vunpack.c.l.b16 %v300
    %v313 = vpack.c.b16 %v310, %v309
    %v314 = vpack.c.b16 %v312, %v311
    %v318 = vsel %vm111, %v304, 0
    %320 = vmatpush.bf16.msra.mxu0 0
    %321 = vmatpush.bf16.msra.mxu0 0
    %322 = vmatpush.bf16.msra.mxu0 0
    %323 = vmatpush.bf16.msra.mxu0 0
    %324 = vmatpush.bf16.msra.mxu0 0
    %325 = vmatpush.bf16.msra.mxu0 0
    %326 = vmatpush.bf16.msra.mxu0 %v314
    %327 = vmatpush.bf16.msra.mxu0 %v313
    %328 = vmatmul.bf16.gmra.mxu0 %v318
    %v329 = vpop.f32.mrf.mxu0
    %v330 = vadd.f32 %v301, %v329
    %v331 = vpop.f32.mrf.mxu0
    %v332 = vadd.f32 %v301, %v331
    %333 = vdwg.mxu0
    %334 = vst [vmem:[%s4] sm:$0xff] %v330
    %335 = vst [vmem:[%s4 + $0x8] sm:$0xff] %v332
    %336 = vst.msk [vmem:[%s4] sm:$0xff] %vm111, %v289
    %337 = vst.msk [vmem:[%s4 + $0x8] sm:$0xff] %vm111, %v291
    // Predicated region
    $region38: #{ddpg_critic_forward.1} parent=1 // pred_check
      _
    $region39: #{ddpg_critic_forward.1} parent=1 // pred_check_branch
      %339 = sbr.rel (0) target = $region41
    $region40: #{ddpg_critic_forward.1} parent=1 // pred_region
      _
    $region41: #{ddpg_critic_forward.1} parent=1 // pred_fallthru
      _
    // Predicated region
    $region42: #{ddpg_critic_forward.1} parent=1 // pred_check
      _
    $region43: #{ddpg_critic_forward.1} parent=1 // pred_check_branch
      %341 = sbr.rel (0) target = $region45
    $region44: #{ddpg_critic_forward.1} parent=1 // pred_region
      _
    $region45: #{ddpg_critic_forward.1} parent=1 // pred_fallthru
      _
    %342 = vsyncpa [#allocation4], 1
    %343 = vsyncpa [#allocation6], 1
    %344 = vsyncpa [#allocation9], 1

</llo_original>
